<compile_context>
chip_gen: v7x
topology: tpu7x:2x2x1
jax: 0.10.0
libtpu: 0.0.40
codegen_flags: <defaults>
</compile_context>

<pallas_src>
import functools

import jax
import jax.numpy as jnp
from jax.experimental import pallas as pl
from jax.experimental.pallas import tpu as pltpu


_NUM_CORES = 2        # leading 'parallel' grid axis: ~2x on v7x, harmless on v5e/v6e
_MAX_TILE_N = 32768   # rows per block: 8 sublanes * 32768 lanes * 4 B = 1 MiB


def _round_up(x, m):
    return ((x + m - 1) // m) * m


def _focal_loss_kernel(preds_ref, labels_ref, alpha_ref, out_ref, *,
                       gamma, n_valid, tile_n, tiles_per_core):
    ci = pl.program_id(0)          # core / 'parallel' axis
    ti = pl.program_id(1)          # row-tile / 'arbitrary' (reduction) axis

    # Zero this core's resident accumulator block on its first tile.
    @pl.when(ti == 0)
    def _():
        out_ref[...] = jnp.zeros_like(out_ref)

    x = preds_ref[...]             # (C, T) f32 logits, classes on sublanes
    lbl = labels_ref[...]          # (1, T) i32 class ids (lane-dense)
    alpha = alpha_ref[...]         # (C, 1) f32 per-class weights

    # Stable softmax pieces along the class (sublane) axis; exp(z) is reused
    # for both the denominator and the gathered probability (no exp(logp)).
    m = jnp.max(x, axis=0, keepdims=True)                     # (1, T)
    z = x - m
    ez = jnp.exp(z)                                           # (C, T)
    s = jnp.sum(ez, axis=0, keepdims=True)                    # (1, T)

    # gather(1, labels) as one-hot select + sublane (XLU) reduce — not MXU.
    cls = jax.lax.broadcasted_iota(jnp.int32, x.shape, 0)     # (C, T)
    oh = (cls == lbl).astype(x.dtype)                         # (C, T)

    z_sel = jnp.sum(oh * z, axis=0, keepdims=True)            # (1, T)
    ez_sel = jnp.sum(oh * ez, axis=0, keepdims=True)          # (1, T)
    a_sel = jnp.sum(oh * alpha, axis=0, keepdims=True)        # (1, T)

    p = ez_sel * pl.reciprocal(s, approx=True)                # softmax[label]
    logp = z_sel - jnp.log(s)                                 # log_softmax[label]

    # (1 - p)**gamma: integer gamma -> pure VPU multiplies; clamp base at 0.
    base = jnp.maximum(1.0 - p, 0.0)
    if float(gamma) == int(gamma) and gamma >= 0:
        w = jax.lax.integer_pow(base, int(gamma))
    else:
        w = jnp.power(base, jnp.float32(gamma))

    loss = -a_sel * w * logp                                  # (1, T)

    # Mask rows that only exist because of padding up to a tile multiple.
    tile_idx = ci * tiles_per_core + ti
    col = jax.lax.broadcasted_iota(jnp.int32, loss.shape, 1) + tile_idx * tile_n
    loss = jnp.where(col < n_valid, loss, 0.0)

    # Per-core running partial sum (scalar broadcast into the resident block).
    out_ref[...] += jnp.sum(loss)


class FocalLoss:
    """JAX/Pallas port of the PyTorch FocalLoss module (forward only)."""

    def __init__(self, alpha=0.25, gamma=2, num_classes=8, size_average=True):
        self.size_average = size_average
        self.gamma = float(gamma)
        self.num_classes = num_classes
        if isinstance(alpha, (list, tuple)):
            assert len(alpha) == num_classes
            self.alpha = jnp.asarray(alpha, dtype=jnp.float32)
        else:
            assert alpha < 1
            a = jnp.zeros((num_classes,), dtype=jnp.float32)
            a = a.at[0].add(alpha)
            a = a.at[1:].add(1.0 - alpha)
            self.alpha = a

    def __call__(self, preds, labels):
        preds = jnp.asarray(preds)
        labels = jnp.asarray(labels)
        # Matches the PyTorch module: >=2-D labels are argmax'ed over the last
        # axis (i.e. treated as one-hot / per-class scores).
        if labels.ndim >= 2:
            labels = jnp.argmax(labels, axis=-1)

        c = preds.shape[-1]
        assert c == self.num_classes, (c, self.num_classes)

        preds2 = preds.reshape(-1, c).astype(jnp.float32)     # (N, C)
        labels1 = labels.reshape(-1).astype(jnp.int32)        # (N,)
        n = preds2.shape[0]

        # Row tiling: lane-dense blocks of up to _MAX_TILE_N rows, split across
        # a leading 'parallel' axis of 2 (both v7x TensorCores).
        tile_n = min(_round_up(n, 128), _MAX_TILE_N)
        n_pad = _round_up(n, _NUM_CORES * tile_n)
        tiles_per_core = n_pad // (_NUM_CORES * tile_n)
        pad = n_pad - n

        # Lane-dense operand layouts: classes on sublanes, rows on lanes.
        preds_t = jnp.pad(preds2.T, ((0, 0), (0, pad)))              # (C, n_pad)
        labels_t = jnp.pad(labels1[None, :], ((0, 0), (0, pad)))     # (1, n_pad)
        alpha2 = self.alpha.reshape(c, 1).astype(jnp.float32)        # (C, 1)

        kernel = functools.partial(
            _focal_loss_kernel,
            gamma=self.gamma,
            n_valid=n,
            tile_n=tile_n,
            tiles_per_core=tiles_per_core,
        )

        out = pl.pallas_call(
            kernel,
            grid=(_NUM_CORES, tiles_per_core),
            in_specs=[
                # preds (C, n_pad): one (C, tile_n) block per grid step
                pl.BlockSpec((c, tile_n),
                             lambda ci, ti: (0, ci * tiles_per_core + ti)),
                # labels (1, n_pad): lane-dense int32 row
                pl.BlockSpec((1, tile_n),
                             lambda ci, ti: (0, ci * tiles_per_core + ti)),
                # alpha (C, 1): same tiny block every step
                pl.BlockSpec((c, 1), lambda ci, ti: (0, 0)),
            ],
            # One resident, (8,128)-aligned accumulator block per core.
            out_specs=pl.BlockSpec((1, 8, 128), lambda ci, ti: (ci, 0, 0)),
            out_shape=jax.ShapeDtypeStruct((_NUM_CORES, 8, 128), jnp.float32),
            compiler_params=pltpu.CompilerParams(
                dimension_semantics=("parallel", "arbitrary"),
                vmem_limit_bytes=32 * 1024 * 1024,
            ),
        )(preds_t, labels_t, alpha2)

        total = jnp.sum(out[:, 0, 0])          # add the per-core partial sums
        if self.size_average:
            total = total / jnp.float32(n)     # divide by the TRUE row count
        return total


def _reference_focal_loss(preds, labels, alpha_vec, gamma, size_average):
    """Pure-JAX reference mirroring the PyTorch forward exactly."""
    if labels.ndim >= 2:
        labels = jnp.argmax(labels, axis=-1)
    c = preds.shape[-1]
    preds2 = preds.reshape(-1, c).astype(jnp.float32)
    lbl = labels.reshape(-1).astype(jnp.int32)
    logsoft = jax.nn.log_softmax(preds2, axis=1)
    logp = jnp.take_along_axis(logsoft, lbl[:, None], axis=1)[:, 0]
    p = jnp.exp(logp)
    a = alpha_vec[lbl]
    loss = -a * jnp.power(1.0 - p, gamma) * logp
    return jnp.mean(loss) if size_average else jnp.sum(loss)


if __name__ == "__main__":
    key = jax.random.PRNGKey(0)
    k1, k2, k3, k4 = jax.random.split(key, 4)

    C = 8
    fl = FocalLoss(alpha=0.25, gamma=2, num_classes=C, size_average=True)

    # Case 1: classification — preds [B, C], integer labels [B]
    B = 16
    preds = jax.random.normal(k1, (B, C), dtype=jnp.float32)
    labels = jax.random.randint(k2, (B,), 0, C, dtype=jnp.int32)
    loss = jax.block_until_ready(fl(preds, labels))
    ref = jax.block_until_ready(
        _reference_focal_loss(preds, labels, fl.alpha, fl.gamma, fl.size_average))
    assert jnp.allclose(loss, ref, rtol=2e-3, atol=1e-5), (loss, ref)

    # Case 2: detection — preds [B, N, C], one-hot labels [B, N, C]
    B2, Nb = 2, 8
    preds_det = jax.random.normal(k3, (B2, Nb, C), dtype=jnp.float32)
    cls_ids = jax.random.randint(k4, (B2, Nb), 0, C, dtype=jnp.int32)
    labels_onehot = jax.nn.one_hot(cls_ids, C, dtype=jnp.float32)
    loss2 = jax.block_until_ready(fl(preds_det, labels_onehot))
    ref2 = jax.block_until_ready(
        _reference_focal_loss(preds_det, labels_onehot, fl.alpha, fl.gamma,
                              fl.size_average))
    assert jnp.allclose(loss2, ref2, rtol=2e-3, atol=1e-5), (loss2, ref2)

    print("KERNEL_OK")
</pallas_src>

<mosaic_0001>
module attributes {stable_mosaic.version = 11 : i64} {
  func.func @_focal_loss_kernel(%arg0: i32, %arg1: i32, %arg2: memref<8x128xf32, #tpu.memory_space<vmem>>, %arg3: memref<1x128xi32, #tpu.memory_space<vmem>>, %arg4: memref<8x1xf32, #tpu.memory_space<vmem>>, %arg5: memref<1x8x128xf32, #tpu.memory_space<vmem>>) attributes {dimension_semantics = [#tpu.dimension_semantics<parallel>, #tpu.dimension_semantics<arbitrary>], iteration_bounds = array<i64: 2, 1>, scalar_prefetch = 0 : i64, scratch_operands = 0 : i64, tpu.core_type = #tpu.core_type<tc>, window_params = [{transform_indices = @transform_0, window_bounds = array<i64: 8, 128>}, {transform_indices = @transform_1, window_bounds = array<i64: 1, 128>}, {pipeline_mode = #tpu.pipeline_mode<synchronous>, transform_indices = @transform_2, window_bounds = array<i64: 8, 1>}, {transform_indices = @transform_3, window_bounds = array<i64: 1, 8, 128>}]} {
    %c0_i32 = arith.constant 0 : i32
    %0 = arith.cmpi eq, %arg1, %c0_i32 : i32
    %1 = arith.extui %0 : i1 to i32
    %c0_i32_0 = arith.constant 0 : i32
    %2 = arith.cmpi ne, %1, %c0_i32_0 : i32
    scf.if %2 {
      %cst_21 = arith.constant 0.000000e+00 : f32
      %59 = vector.broadcast %cst_21 : f32 to vector<1x8x128xf32>
      %c0_22 = arith.constant 0 : index
      %c0_23 = arith.constant 0 : index
      %c0_24 = arith.constant 0 : index
      %60 = vector.load %arg5[%c0_22, %c0_23, %c0_24] : memref<1x8x128xf32, #tpu.memory_space<vmem>>, vector<1x8x128xf32>
      tpu.vector_store %arg5[%c0_22, %c0_23, %c0_24], %59 {strides = array<i32>} : memref<1x8x128xf32, #tpu.memory_space<vmem>>, vector<1x8x128xf32>,
    } else {
    }
    %c0 = arith.constant 0 : index
    %c0_1 = arith.constant 0 : index
    %3 = vector.load %arg2[%c0, %c0_1] : memref<8x128xf32, #tpu.memory_space<vmem>>, vector<8x128xf32>
    %c0_2 = arith.constant 0 : index
    %c0_3 = arith.constant 0 : index
    %4 = vector.load %arg3[%c0_2, %c0_3] : memref<1x128xi32, #tpu.memory_space<vmem>>, vector<1x128xi32>
    %c0_4 = arith.constant 0 : index
    %c0_5 = arith.constant 0 : index
    %5 = vector.load %arg4[%c0_4, %c0_5] : memref<8x1xf32, #tpu.memory_space<vmem>>, vector<8x1xf32>
    %cst = arith.constant dense<0xFF800000> : vector<128xf32>
    %6 = vector.multi_reduction <maximumf>, %3, %cst [0] : vector<8x128xf32> to vector<128xf32>
    %7 = vector.shape_cast %6 : vector<128xf32> to vector<1x128xf32>
    %8 = vector.broadcast %7 : vector<1x128xf32> to vector<8x128xf32>
    %9 = arith.subf %3, %8 : vector<8x128xf32>
    %10 = math.exp %9 : vector<8x128xf32>
    %cst_6 = arith.constant dense<0.000000e+00> : vector<128xf32>
    %11 = vector.multi_reduction <add>, %10, %cst_6 [0] : vector<8x128xf32> to vector<128xf32>
    %12 = vector.shape_cast %11 : vector<128xf32> to vector<1x128xf32>
    %13 = tpu.iota {dimensions = array<i32: 0>} : vector<8x128xi32>
    %14 = vector.broadcast %4 : vector<1x128xi32> to vector<8x128xi32>
    %15 = arith.cmpi eq, %13, %14 : vector<8x128xi32>
    %16 = arith.extui %15 : vector<8x128xi1> to vector<8x128xi32>
    %17 = arith.sitofp %16 : vector<8x128xi32> to vector<8x128xf32>
    %18 = arith.mulf %17, %9 : vector<8x128xf32>
    %cst_7 = arith.constant dense<0.000000e+00> : vector<128xf32>
    %19 = vector.multi_reduction <add>, %18, %cst_7 [0] : vector<8x128xf32> to vector<128xf32>
    %20 = vector.shape_cast %19 : vector<128xf32> to vector<1x128xf32>
    %21 = arith.mulf %17, %10 : vector<8x128xf32>
    %cst_8 = arith.constant dense<0.000000e+00> : vector<128xf32>
    %22 = vector.multi_reduction <add>, %21, %cst_8 [0] : vector<8x128xf32> to vector<128xf32>
    %23 = vector.shape_cast %22 : vector<128xf32> to vector<1x128xf32>
    %24 = vector.broadcast %5 : vector<8x1xf32> to vector<8x128xf32>
    %25 = arith.mulf %17, %24 : vector<8x128xf32>
    %cst_9 = arith.constant dense<0.000000e+00> : vector<128xf32>
    %26 = vector.multi_reduction <add>, %25, %cst_9 [0] : vector<8x128xf32> to vector<128xf32>
    %27 = vector.shape_cast %26 : vector<128xf32> to vector<1x128xf32>
    %28 = tpu.reciprocal %12 {approx = true} : vector<1x128xf32> -> vector<1x128xf32>
    %29 = arith.mulf %23, %28 : vector<1x128xf32>
    %30 = math.log %12 : vector<1x128xf32>
    %31 = arith.subf %20, %30 : vector<1x128xf32>
    %cst_10 = arith.constant 1.000000e+00 : f32
    %32 = vector.broadcast %cst_10 : f32 to vector<1x128xf32>
    %33 = arith.subf %32, %29 : vector<1x128xf32>
    %cst_11 = arith.constant 0.000000e+00 : f32
    %34 = vector.broadcast %cst_11 : f32 to vector<1x128xf32>
    %35 = arith.maximumf %33, %34 : vector<1x128xf32>
    %36 = arith.mulf %35, %35 : vector<1x128xf32>
    %cst_12 = arith.constant 0.000000e+00 : f32
    %37 = vector.broadcast %cst_12 : f32 to vector<1x128xf32>
    %38 = arith.subf %37, %27 : vector<1x128xf32>
    %39 = arith.mulf %38, %36 : vector<1x128xf32>
    %40 = arith.mulf %39, %31 : vector<1x128xf32>
    %c1_i32 = arith.constant 1 : i32
    %41 = arith.muli %arg0, %c1_i32 : i32
    %42 = arith.addi %41, %arg1 : i32
    %43 = tpu.iota {dimensions = array<i32: 1>} : vector<1x128xi32>
    %c128_i32 = arith.constant 128 : i32
    %44 = arith.muli %42, %c128_i32 : i32
    %45 = vector.broadcast %44 : i32 to vector<1x128xi32>
    %46 = arith.addi %43, %45 : vector<1x128xi32>
    %c16_i32 = arith.constant 16 : i32
    %47 = vector.broadcast %c16_i32 : i32 to vector<1x128xi32>
    %48 = arith.cmpi slt, %46, %47 : vector<1x128xi32>
    %cst_13 = arith.constant 0.000000e+00 : f32
    %49 = vector.broadcast %cst_13 : f32 to vector<1x128xf32>
    %50 = arith.select %48, %40, %49 : vector<1x128xi1>, vector<1x128xf32>
    %c0_14 = arith.constant 0 : index
    %c0_15 = arith.constant 0 : index
    %c0_16 = arith.constant 0 : index
    %51 = vector.load %arg5[%c0_14, %c0_15, %c0_16] : memref<1x8x128xf32, #tpu.memory_space<vmem>>, vector<1x8x128xf32>
    %52 = vector.shape_cast %50 : vector<1x128xf32> to vector<1x1x128xf32>
    %cst_17 = arith.constant dense<0.000000e+00> : vector<1xf32>
    %53 = vector.multi_reduction <add>, %52, %cst_17 [1, 2] : vector<1x1x128xf32> to vector<1xf32>
    %54 = vector.shape_cast %53 : vector<1xf32> to vector<1x1x1xf32>
    %55 = vector.extract %54[0, 0, 0] : f32 from vector<1x1x1xf32>
    %56 = vector.broadcast %55 : f32 to vector<1x8x128xf32>
    %57 = arith.addf %51, %56 : vector<1x8x128xf32>
    %c0_18 = arith.constant 0 : index
    %c0_19 = arith.constant 0 : index
    %c0_20 = arith.constant 0 : index
    %58 = vector.load %arg5[%c0_18, %c0_19, %c0_20] : memref<1x8x128xf32, #tpu.memory_space<vmem>>, vector<1x8x128xf32>
    tpu.vector_store %arg5[%c0_18, %c0_19, %c0_20], %57 {strides = array<i32>} : memref<1x8x128xf32, #tpu.memory_space<vmem>>, vector<1x8x128xf32>,
    return
  }
  func.func @transform_0(%arg0: i32, %arg1: i32) -> (i32, i32) {
    %c1_i32 = arith.constant 1 : i32
    %0 = arith.muli %arg0, %c1_i32 : i32
    %1 = arith.addi %0, %arg1 : i32
    %c0_i32 = arith.constant 0 : i32
    %c0_i32_0 = arith.constant 0 : i32
    return %c0_i32, %1 : i32, i32
  }
  func.func @transform_1(%arg0: i32, %arg1: i32) -> (i32, i32) {
    %c1_i32 = arith.constant 1 : i32
    %0 = arith.muli %arg0, %c1_i32 : i32
    %1 = arith.addi %0, %arg1 : i32
    %c0_i32 = arith.constant 0 : i32
    %c0_i32_0 = arith.constant 0 : i32
    return %c0_i32, %1 : i32, i32
  }
  func.func @transform_2(%arg0: i32, %arg1: i32) -> (i32, i32) {
    %c0_i32 = arith.constant 0 : i32
    %c0_i32_0 = arith.constant 0 : i32
    %c0_i32_1 = arith.constant 0 : i32
    return %c0_i32, %c0_i32_0 : i32, i32
  }
  func.func @transform_3(%arg0: i32, %arg1: i32) -> (i32, i32, i32) {
    %c0_i32 = arith.constant 0 : i32
    %c0_i32_0 = arith.constant 0 : i32
    %c0_i32_1 = arith.constant 0 : i32
    return %arg0, %c0_i32, %c0_i32_0 : i32, i32, i32
  }
}

</mosaic_0001>

<llo_original>
// kernel: tpu_custom_call.1
$region0: #{tpu_custom_call.1}
  #allocation0 [shape = 'u32[]', space=smem, size = 0x4, offset = 0x4, fixed_abs, tag = 'smem constant byte address 0x4 - core index']
  #allocation1 [shape = 'u32[144,128]{1,0:T(1,128)}', space=vmem, size = 0x12000, scoped, tag = 'internal scratch']
  %s0 = inlined_call_operand.hbm [shape: f32[8,256], index: 0, kind: input, shape index: {}]
  %s1 = inlined_call_operand.vmem [shape: s32[1,256], index: 1, kind: input, shape index: {}]
  %s2 = inlined_call_operand.vmem [shape: f32[8,1], index: 2, kind: input, shape index: {}]
  %s3 = inlined_call_operand.hbm [shape: f32[2,8,128], index: 3, kind: output, shape index: {}]
  %s4 = sld [smem:[#allocation0]]
  $region53: #{tpu_custom_call.1} parent=0
    _
  %s6 = ssub.s32 1, %s4
  %s7 = scalar_select 0, %s6, %s4
  $region1: #{tpu_custom_call.1} parent=0
    #allocation2 [shape = 'u8[8192]{0}', space=vmem, size = 0x2000, scoped, tag = 'input window, operand 0']
    #allocation3 [shape = 's32[2]{0}', space=sflag, size = 0x8, scoped, tag = 'scoped memory for tpu_custom_call.1']
    #allocation4 [shape = 's32[2]{0}', space=sflag, size = 0x8, scoped, tag = 'scoped memory for tpu_custom_call.1']
    #allocation5 [shape = 'u8[8192]{0}', space=vmem, size = 0x2000, scoped, tag = 'output window, operand 0']
    %8 = vsyncpa [#allocation3], 0
    %s9 = scalar_lea.sflag [#allocation3], 1
    %10 = vsyncpa %s9, 0
    %11 = vsyncpa [#allocation4], 0
    %s12 = scalar_lea.sflag [#allocation4], 1
    %13 = vsyncpa %s12, 0
    loop: start=0, step=1, limit=4
    $region2: #{tpu_custom_call.1} parent=1 // loop_pre_header
      _
    $region3: #{tpu_custom_call.1} parent=1 // loop_header
      %s15 = sphi 0, %s19
      %p16 = scmp.ge.s32.totalorder %s15, 4
      %s22 = sphi 0, %s34
      %s23 = sphi 0, %s30
      %s24 = sphi 0, %s22
      %s25 = sphi 0, %s23
      %s26 = sphi 0, %s24
      %s27 = sphi 0, %s25
      %s39 = sphi 0, %s41
      %s42 = sphi 0, %s39
      %s43 = sphi 0, %s42
      %s59 = sphi 0, %s43
      %s67 = sphi 0, %s69
      %s70 = sphi 0, %s67
      %s71 = sphi 0, %s70
      %s87 = sphi 0, %s71
      %s91 = sphi 0, %s91
      %s93 = sphi 0, %s91
      %s94 = sphi 0, %s93
      %s108 = sphi 0, %s94
      %s114 = sphi 0, %s116
      %s117 = sphi 0, %s114
      %s118 = sphi 0, %s117
      %s134 = sphi 0, %s118
    $region4: #{tpu_custom_call.1} parent=1 // loop_header_branch
      %18 = sbr.rel (%p16) target = $region8
    $region5: #{tpu_custom_call.1} parent=1 // loop_body
      %s20 = ssub.s32 %s15, 1
      %s21 = ssub.s32 %s15, 2
      %s28 = sadd.s32 1, %s23
      %p29 = scmp.ge.s32.totalorder %s28, 1
      %s30 = scalar_select %p29, 0, %s28
      %s31 = sadd.s32 1, %s22
      %s32 = scalar_select %p29, %s31, %s22
      %p33 = scmp.ge.s32.totalorder %s32, 2
      %s34 = scalar_select %p33, 0, %s32
      %s35 = sadd.s32 %s22, %s23
      %s36 = sadd.s32 %s34, %s30
      %s37 = ssub.s32 %s35, %s36
      %p38 = scmp.eq.s32.totalorder %s37, 0
      %s40 = sadd.s32 %s39, 1
      %s41 = scalar_select %p38, %s39, %s40
      %p44 = pneg %p38
      %p45 = scmp.eq.s32.totalorder %s15, 1
      %p46 = por %p44, %p45
      %p47 = scmp.ne.s32.totalorder %s39, %s42
      %p48 = scmp.eq.s32.totalorder %s15, 0
      %p49 = por %p47, %p48
      %p50 = scmp.ne.s32.totalorder %s39, %s42
      %p51 = scmp.eq.s32.totalorder %s20, 1
      %p52 = por %p50, %p51
      %p53 = scmp.ne.s32.totalorder %s42, %s43
      %p54 = scmp.eq.s32.totalorder %s20, 0
      %p55 = por %p53, %p54
      %p56 = scmp.ne.s32.totalorder %s42, %s43
      %p57 = scmp.eq.s32.totalorder %s21, 1
      %p58 = por %p56, %p57
      %p60 = scmp.ne.s32.totalorder %s43, %s59
      %p61 = scmp.eq.s32.totalorder %s21, 0
      %p62 = por %p60, %p61
      %s63 = sadd.s32 %s22, %s23
      %s64 = sadd.s32 %s34, %s30
      %s65 = ssub.s32 %s63, %s64
      %p66 = scmp.eq.s32.totalorder %s65, 0
      %s68 = sadd.s32 %s67, 1
      %s69 = scalar_select %p66, %s67, %s68
      %p72 = pneg %p66
      %p73 = scmp.eq.s32.totalorder %s15, 1
      %p74 = por %p72, %p73
      %p75 = scmp.ne.s32.totalorder %s67, %s70
      %p76 = scmp.eq.s32.totalorder %s15, 0
      %p77 = por %p75, %p76
      %p78 = scmp.ne.s32.totalorder %s67, %s70
      %p79 = scmp.eq.s32.totalorder %s20, 1
      %p80 = por %p78, %p79
      %p81 = scmp.ne.s32.totalorder %s70, %s71
      %p82 = scmp.eq.s32.totalorder %s20, 0
      %p83 = por %p81, %p82
      %p84 = scmp.ne.s32.totalorder %s70, %s71
      %p85 = scmp.eq.s32.totalorder %s21, 1
      %p86 = por %p84, %p85
      %p88 = scmp.ne.s32.totalorder %s71, %s87
      %p89 = scmp.eq.s32.totalorder %s21, 0
      %p90 = por %p88, %p89
      %s92 = sadd.s32 %s91, 1
      %p95 = scmp.eq.s32.totalorder %s15, 1
      %p96 = scmp.ne.s32.totalorder %s91, %s93
      %p97 = scmp.eq.s32.totalorder %s15, 0
      %p98 = por %p96, %p97
      %p99 = scmp.ne.s32.totalorder %s91, %s93
      %p100 = scmp.eq.s32.totalorder %s20, 1
      %p101 = por %p99, %p100
      %p102 = scmp.ne.s32.totalorder %s93, %s94
      %p103 = scmp.eq.s32.totalorder %s20, 0
      %p104 = por %p102, %p103
      %p105 = scmp.ne.s32.totalorder %s93, %s94
      %p106 = scmp.eq.s32.totalorder %s21, 1
      %p107 = por %p105, %p106
      %p109 = scmp.ne.s32.totalorder %s94, %s108
      %p110 = scmp.eq.s32.totalorder %s21, 0
      %p111 = por %p109, %p110
      %s112 = ssub.s32 %s22, %s34
      %p113 = scmp.eq.s32.totalorder %s112, 0
      %s115 = sadd.s32 %s114, 1
      %s116 = scalar_select %p113, %s114, %s115
      %p119 = pneg %p113
      %p120 = scmp.eq.s32.totalorder %s15, 1
      %p121 = por %p119, %p120
      %p122 = scmp.ne.s32.totalorder %s114, %s117
      %p123 = scmp.eq.s32.totalorder %s15, 0
      %p124 = por %p122, %p123
      %p125 = scmp.ne.s32.totalorder %s114, %s117
      %p126 = scmp.eq.s32.totalorder %s20, 1
      %p127 = por %p125, %p126
      %p128 = scmp.ne.s32.totalorder %s117, %s118
      %p129 = scmp.eq.s32.totalorder %s20, 0
      %p130 = por %p128, %p129
      %p131 = scmp.ne.s32.totalorder %s117, %s118
      %p132 = scmp.eq.s32.totalorder %s21, 1
      %p133 = por %p131, %p132
      %p135 = scmp.ne.s32.totalorder %s118, %s134
      %p136 = scmp.eq.s32.totalorder %s21, 0
      %p137 = por %p135, %p136
      %p138 = scmp.le.s32.totalorder 1, %s15
      %p139 = scmp.lt.s32.totalorder %s15, 3
      %p140 = pnand %p138, %p139
      %p141 = pneg %p140
      // Predicated region
      $region9: #{tpu_custom_call.1} parent=5 // pred_check
        _
      $region10: #{tpu_custom_call.1} parent=5 // pred_check_branch
        %143 = sbr.rel (%p140) target = $region12
      $region11: #{tpu_custom_call.1} parent=5 // pred_region
        %s144 = ssub.s32 %s15, 1
        // Predicated region
        $region13: #{tpu_custom_call.1} parent=11 // pred_check
          %p145 = pneg %p104
        $region14: #{tpu_custom_call.1} parent=11 // pred_check_branch
          %147 = sbr.rel (%p145) target = $region16
        $region15: #{tpu_custom_call.1} parent=11 // pred_region
          _
        $region16: #{tpu_custom_call.1} parent=11 // pred_fallthru
          _
      $region12: #{tpu_custom_call.1} parent=5 // pred_fallthru
        _
      %p148 = scmp.lt.s32.totalorder %s15, 2
      // Predicated region
      $region17: #{tpu_custom_call.1} parent=5 // pred_check
        %p149 = pneg %p148
      $region18: #{tpu_custom_call.1} parent=5 // pred_check_branch
        %151 = sbr.rel (%p149) target = $region20
      $region19: #{tpu_custom_call.1} parent=5 // pred_region
        // Predicated region
        $region21: #{tpu_custom_call.1} parent=19 // pred_check
          %p152 = pneg %p49
        $region22: #{tpu_custom_call.1} parent=19 // pred_check_branch
          %154 = sbr.rel (%p152) target = $region24
        $region23: #{tpu_custom_call.1} parent=19 // pred_region
          %s155 = sand.u32 %s39, 1
          %s156 = scalar_lea.sflag [#allocation3], %s155
          %s157 = sand.u32 %s39, 1
          %s158 = smul.addr %s157, 8
          %s159 = scalar_lea.vmem [#allocation2], %s158
          %s160 = sadd.s32 %s22, %s23
          %s162 = ssub.s32 128, 128
          %163 = vsyncadd %s156, %s162
          %s164 = smul.addr %s160, 128
          %s165 = scalar_lea.hbm %s0, %s164
          %s167 = sshll.u32 %s159, 4
          %s168 = int_to_ptr.vmem [resolvable:$true] %s167
          %170 = dma.hbm_to_vmem [thread:$0]  %s165, 128, %s168, %s156
        $region24: #{tpu_custom_call.1} parent=19 // pred_fallthru
          _
        // Predicated region
        $region25: #{tpu_custom_call.1} parent=19 // pred_check
          %p171 = pneg %p77
        $region26: #{tpu_custom_call.1} parent=19 // pred_check_branch
          %173 = sbr.rel (%p171) target = $region28
        $region27: #{tpu_custom_call.1} parent=19 // pred_region
          %s174 = sadd.s32 %s22, %s23
          %p175 = scmp.lt.s32.totalorder %s174, 1
          %s176 = scalar_select %p175, %s174, 1
          %s177 = scalar_lea.vmem %s1, %s176
          %s178 = sadd.s32 %s22, %s23
        $region28: #{tpu_custom_call.1} parent=19 // pred_fallthru
          _
      $region20: #{tpu_custom_call.1} parent=5 // pred_fallthru
        _
      %p179 = scmp.le.s32.totalorder 1, %s15
      %p180 = scmp.lt.s32.totalorder %s15, 3
      %p181 = pnand %p179, %p180
      %p182 = pneg %p181
      // Predicated region
      $region29: #{tpu_custom_call.1} parent=5 // pred_check
        _
      $region30: #{tpu_custom_call.1} parent=5 // pred_check_branch
        %184 = sbr.rel (%p181) target = $region32
      $region31: #{tpu_custom_call.1} parent=5 // pred_region
        %s185 = ssub.s32 %s15, 1
        %s186 = sand.u32 %s42, 1
        %s187 = scalar_lea.sflag [#allocation3], %s186
        %s188 = sand.u32 %s42, 1
        %s189 = smul.addr %s188, 8
        %s190 = scalar_lea.vmem [#allocation2], %s189
        // Predicated region
        $region33: #{tpu_custom_call.1} parent=31 // pred_check
          %p191 = pneg %p55
        $region34: #{tpu_custom_call.1} parent=31 // pred_check_branch
          %193 = sbr.rel (%p191) target = $region36
        $region35: #{tpu_custom_call.1} parent=31 // pred_region
          %194 = dma.done %s187, 128
        $region36: #{tpu_custom_call.1} parent=31 // pred_fallthru
          _
        %s195 = sand.u32 %s42, 1
        %s196 = scalar_lea.sflag [#allocation3], %s195
        %s197 = sand.u32 %s42, 1
        %s198 = smul.addr %s197, 8
        %s199 = scalar_lea.vmem [#allocation2], %s198
        %p200 = pneg %p55
        %p201 = pneg %p52
        %s202 = sadd.s32 %s24, %s25
        %p203 = scmp.lt.s32.totalorder %s202, 1
        %s204 = scalar_select %p203, %s202, 1
        %s205 = scalar_lea.vmem %s1, %s204
        %p206 = pneg %p83
        %p207 = pneg %p80
        %p208 = pneg %p104
        %p209 = pneg %p101
        %p210 = pneg %p130
        %p211 = pneg %p127
        %s212 = sand.u32 %s117, 1
        %s213 = scalar_lea.sflag [#allocation4], %s212
        %s214 = sand.u32 %s117, 1
        %s215 = smul.addr %s214, 8
        %s216 = scalar_lea.vmem [#allocation5], %s215
        %s217 = sadd.s32 %s24, %s25
        %s218 = sadd.s32 %s24, %s25
        %p219 = scmp.lt.s32.totalorder %s218, 1
        %s220 = scalar_select %p219, %s218, 1
        %s221 = scalar_lea.vmem %s1, %s220
        %s222 = sadd.s32 %s24, %s25
        %p223 = scmp.eq.s32.totalorder %s25, 0
        // Predicated region
        $region37: #{tpu_custom_call.1} parent=31 // pred_check
          %p224 = pneg %p223
        $region38: #{tpu_custom_call.1} parent=31 // pred_check_branch
          %226 = sbr.rel (%p224) target = $region40
        $region39: #{tpu_custom_call.1} parent=31 // pred_region
          %227 = vst [vmem:[%s216] sm:$0xff] 0.0
        $region40: #{tpu_custom_call.1} parent=31 // pred_fallthru
          _
        %v228 = vld [vmem:[%s190] sm:$0xff]
        %v229 = vld [vmem:[%s221] sm:$0x1]
        %v230 = vld [vmem:[%s2] sm:$0xff]
        %v231 = vrot.slane %v228, 4
        %v232 = vmax.f32 %v228, %v231
        %v233 = vrot.slane %v232, 2
        %v234 = vmax.f32 %v232, %v233
        %v235 = vrot.slane %v234, 1
        %v236 = vmax.f32 %v234, %v235
        %v237 = vsub.f32 %v228, %v236
        %v238 = vmul.f32 %v237, 1.442695
        %v239 = vpow.pop %v238
        %v240 = vrot.slane %v239, 4
        %v241 = vadd.f32 %v239, %v240
        %v242 = vrot.slane %v241, 2
        %v243 = vadd.f32 %v241, %v242
        %v244 = vrot.slane %v243, 1
        %v245 = vadd.f32 %v243, %v244
        %v246 = vlaneseq
        %v247 = vshrl.u32 %v246, 7
        %v248 = vlaneseq
        %v249 = vshrl.u32 %v248, 7
        %v250 = vsub.s32 0, %v249
        %v251 = vrot.slane %v229, %v250
        %vm252 = vcmp.eq.s32.totalorder %v247, %v251
        %v253 = vsel %vm252, 1, 0
        %v254 = vcvt.s32.f32 %v253
        %v255 = vmul.f32 %v254, %v237
        %v256 = vrot.slane %v255, 4
        %v257 = vadd.f32 %v255, %v256
        %v258 = vrot.slane %v257, 2
        %v259 = vadd.f32 %v257, %v258
        %v260 = vrot.slane %v259, 1
        %v261 = vadd.f32 %v259, %v260
        %v262 = vmul.f32 %v254, %v239
        %v263 = vrot.slane %v262, 4
        %v264 = vadd.f32 %v262, %v263
        %v265 = vrot.slane %v264, 2
        %v266 = vadd.f32 %v264, %v265
        %v267 = vrot.slane %v266, 1
        %v268 = vadd.f32 %v266, %v267
        %270 = vset.pattern.permute.xlu0 0
        %271 = vperm.xlu0 %270, %v230
        %v272 = vpop.permute.xlu0 %271
        %v274 = vmul.f32 %v254, %v272
        %v275 = vrot.slane %v274, 4
        %v276 = vadd.f32 %v274, %v275
        %v277 = vrot.slane %v276, 2
        %v278 = vadd.f32 %v276, %v277
        %v279 = vrot.slane %v278, 1
        %v280 = vadd.f32 %v278, %v279
        %v281 = vrcp.pop %v245
        %v282 = vmul.f32 %v268, %v281
        %v283 = vlog2.pop %v245
        %v284 = vmul.f32 %v283, 0.6931472
        %v285 = vsub.f32 %v261, %v284
        %v286 = vsub.f32 1.0, %v282
        %v287 = vmax.f32 %v286, 0.0
        %v288 = vmul.f32 %v287, %v287
        %v289 = vsub.f32 0.0, %v280
        %v290 = vmul.f32 %v289, %v288
        %v291 = vmul.f32 %v290, %v285
        %s292 = sadd.s32 %s24, %s25
        %v293 = vlaneseq
        %v294 = vand.u32 %v293, 127
        %s295 = smul.u32 %s292, 128
        %v296 = vstv %s295
        %v297 = vadd.s32 %v294, %v296
        %vm298 = vcmp.lt.s32.totalorder %v297, 16
        %v299 = vsel %vm298, %v291, 0.0
        %v300 = vld [vmem:[%s216] sm:$0xff]
        %vm301 = vcmask 1040384
        %v302 = vsel %vm301, %v299, 0.0
        %303 = vadd.xlane.f32.xlu0 %v302
        %v304 = vpop.xlane.xlu0 %303
        %v305 = vrot.slane %v304, 4
        %v306 = vadd.f32 %v304, %v305
        %v307 = vrot.slane %v306, 2
        %v308 = vadd.f32 %v306, %v307
        %v309 = vrot.slane %v308, 1
        %v310 = vadd.f32 %v308, %v309
        %s311 = vtos %v310
        %v312 = vstv %s311
        %v313 = vadd.f32 %v300, %v312
        %314 = vst [vmem:[%s216] sm:$0xff] %v313
        %s315 = sand.u32 %s117, 1
        %s316 = scalar_lea.sflag [#allocation4], %s315
        %s317 = sand.u32 %s117, 1
        %s318 = smul.addr %s317, 8
        %s319 = scalar_lea.vmem [#allocation5], %s318
        // Predicated region
        $region41: #{tpu_custom_call.1} parent=31 // pred_check
          %p320 = pneg %p127
        $region42: #{tpu_custom_call.1} parent=31 // pred_check_branch
          %322 = sbr.rel (%p320) target = $region44
        $region43: #{tpu_custom_call.1} parent=31 // pred_region
          %s324 = ssub.s32 128, 128
          %325 = vsyncadd %s316, %s324
          %s326 = smul.addr %s24, 128
          %s327 = scalar_lea.hbm %s3, %s326
          %s329 = sshll.u32 %s319, 4
          %s330 = int_to_ptr.vmem [resolvable:$true] %s329
          %332 = dma.vmem_to_hbm [thread:$0]  %s330, 128, %s327, %s316
        $region44: #{tpu_custom_call.1} parent=31 // pred_fallthru
          _
      $region32: #{tpu_custom_call.1} parent=5 // pred_fallthru
        _
      %p333 = scmp.le.s32.totalorder 2, %s15
      // Predicated region
      $region45: #{tpu_custom_call.1} parent=5 // pred_check
        %p334 = pneg %p333
      $region46: #{tpu_custom_call.1} parent=5 // pred_check_branch
        %336 = sbr.rel (%p334) target = $region48
      $region47: #{tpu_custom_call.1} parent=5 // pred_region
        %s337 = ssub.s32 %s15, 2
        // Predicated region
        $region49: #{tpu_custom_call.1} parent=47 // pred_check
          %p338 = pneg %p133
        $region50: #{tpu_custom_call.1} parent=47 // pred_check_branch
          %340 = sbr.rel (%p338) target = $region52
        $region51: #{tpu_custom_call.1} parent=47 // pred_region
          %s341 = sand.u32 %s118, 1
          %s342 = scalar_lea.sflag [#allocation4], %s341
          %s343 = sand.u32 %s118, 1
          %s344 = smul.addr %s343, 8
          %s345 = scalar_lea.vmem [#allocation5], %s344
          %346 = dma.done %s342, 128
        $region52: #{tpu_custom_call.1} parent=47 // pred_fallthru
          _
      $region48: #{tpu_custom_call.1} parent=5 // pred_fallthru
        _
    $region6: #{tpu_custom_call.1} parent=1 // loop_footer
      %s19 = sadd.s32 1, %s15
    $region7: #{tpu_custom_call.1} parent=1 // loop_footer_branch
      %14 = sbr.rel target = $region3
    $region8: #{tpu_custom_call.1} parent=1 // loop_exit
      _
    %347 = vsyncpa [#allocation3], 1
    %s348 = scalar_lea.sflag [#allocation3], 1
    %349 = vsyncpa %s348, 1
    %350 = vsyncpa [#allocation4], 1
    %s351 = scalar_lea.sflag [#allocation4], 1
    %352 = vsyncpa %s351, 1

</llo_original>
